<compile_context>
chip_gen: v7x
topology: tpu7x:2x2x1
jax: 0.10.0
libtpu: 0.0.40
codegen_flags: <defaults>
</compile_context>

<pallas_src>
import functools
import math

import jax
import jax.numpy as jnp
from jax.experimental import pallas as pl
from jax.experimental.pallas import tpu as pltpu

NEG_SLOPE = 0.2           # PyG GATConv default LeakyReLU negative slope
MASK_BIG = 1e30           # additive mask magnitude for non-edges
NEG_INIT = -1e30          # running-max init (finite -> no inf-inf NaNs)
VMEM_LIMIT_BYTES = 32 * 1024 * 1024


# ----------------------------------------------------------------------------
# Padding helpers
# ----------------------------------------------------------------------------

def round_up(x, m):
    return ((x + m - 1) // m) * m


def head_pad_dim(c, heads, lane=128):
    """Smallest cp >= c such that heads * cp is a multiple of `lane` (lane-dense slab)."""
    step = lane // math.gcd(heads, lane)
    return round_up(c, step)


def pad_per_head(a, heads, c, cp, axis):
    """Zero-pad each head's block of size c up to cp along `axis` (heads*c -> heads*cp)."""
    if cp == c:
        return a
    shape = a.shape
    a = a.reshape(shape[:axis] + (heads, c) + shape[axis + 1:])
    pad = [(0, 0)] * a.ndim
    pad[axis + 1] = (0, cp - c)
    a = jnp.pad(a, pad)
    return a.reshape(shape[:axis] + (heads * cp,) + shape[axis + 1:])


def build_att_matrix(att_src, att_dst, c, cp):
    """Block-diagonal [heads*cp, 2*heads] so that xw @ A = (a_src | a_dst) for all heads."""
    heads = att_src.shape[0]

    def embed(att):
        m = jnp.zeros((heads, cp, heads), jnp.float32)
        h_idx = jnp.arange(heads)[:, None]
        c_idx = jnp.arange(c)[None, :]
        m = m.at[h_idx, c_idx, h_idx].set(att)
        return m.reshape(heads * cp, heads)

    return jnp.concatenate([embed(att_src), embed(att_dst)], axis=1)


# ----------------------------------------------------------------------------
# Kernel 1: feature projection + attention logits (row-tiled)
# ----------------------------------------------------------------------------

def gat_project_kernel(x_ref, w_ref, a_ref, xw_ref, alpha_ref):
    x = x_ref[...].astype(jnp.bfloat16)                       # [TI, F_in]
    w = w_ref[...]                                            # [F_in, H*Cp] bf16
    xw = jnp.dot(x, w, preferred_element_type=jnp.float32)    # [TI, H*Cp] f32 acc
    # All-head logits via one MXU matmul against the block-diagonal att matrix.
    alpha = jnp.dot(xw, a_ref[...], preferred_element_type=jnp.float32)   # [TI, 2H]
    xw_ref[...] = xw.astype(jnp.bfloat16)
    alpha_ref[...] = alpha


def gat_project(x_pad, w_pad_bf16, a_mat, *, block_rows):
    n_pad, f_in = x_pad.shape
    hcp = w_pad_bf16.shape[1]
    two_h = a_mat.shape[1]
    ni = n_pad // block_rows
    return pl.pallas_call(
        gat_project_kernel,
        out_shape=(jax.ShapeDtypeStruct((n_pad, hcp), jnp.bfloat16),
                   jax.ShapeDtypeStruct((n_pad, two_h), jnp.float32)),
        grid_spec=pltpu.PrefetchScalarGridSpec(
            num_scalar_prefetch=0,
            grid=(ni,),
            in_specs=[pl.BlockSpec((block_rows, f_in), lambda i: (i, 0)),
                      pl.BlockSpec((f_in, hcp), lambda i: (0, 0)),
                      pl.BlockSpec((hcp, two_h), lambda i: (0, 0))],
            out_specs=(pl.BlockSpec((block_rows, hcp), lambda i: (i, 0)),
                       pl.BlockSpec((block_rows, two_h), lambda i: (i, 0)))),
        compiler_params=pltpu.CompilerParams(
            dimension_semantics=("parallel",),
            vmem_limit_bytes=VMEM_LIMIT_BYTES),
    )(x_pad, w_pad_bf16, a_mat)


# ----------------------------------------------------------------------------
# Kernel 2: masked attention softmax + neighbour aggregation (flash-style)
# ----------------------------------------------------------------------------

def gat_attention_kernel(a_dst_ref, a_src_t_ref, v_ref, adj_ref, bias_ref,
                         out_ref, m_ref, l_ref, acc_ref,
                         *, heads, cp, apply_relu):
    j = pl.program_id(1)
    nj = pl.num_programs(1)

    @pl.when(j == 0)
    def _init():
        m_ref[...] = jnp.full(m_ref.shape, NEG_INIT, m_ref.dtype)
        l_ref[...] = jnp.zeros(l_ref.shape, l_ref.dtype)
        acc_ref[...] = jnp.zeros(acc_ref.shape, acc_ref.dtype)

    # Mask work hoisted out of the per-head loop (adjacency arrives as int8).
    adjf = adj_ref[...].astype(jnp.float32)       # [TI, TJ] 0/1
    add_mask = (adjf - 1.0) * MASK_BIG            # 0 where edge, -1e30 where not
    a_dst = a_dst_ref[...]                        # [TI, H]
    a_src_t = a_src_t_ref[...]                    # [H, TJ]

    for h in range(heads):                        # heads is small and static
        # e[i, k] = LeakyReLU(a_dst[i] + a_src[k]) masked over non-edges.
        e = a_dst[:, h:h + 1] + a_src_t[h:h + 1, :]            # [TI, TJ]
        e = jnp.where(e >= 0.0, e, NEG_SLOPE * e) + add_mask

        # Online (flash-style) masked softmax accumulation across j tiles.
        m_prev = m_ref[h]                                      # [TI, 1]
        m_new = jnp.maximum(m_prev, jnp.max(e, axis=-1, keepdims=True))
        corr = jnp.exp(m_prev - m_new)                         # [TI, 1]
        p = jnp.exp(e - m_new) * adjf                          # [TI, TJ]
        l_ref[h] = corr * l_ref[h] + jnp.sum(p, axis=-1, keepdims=True)
        m_ref[h] = m_new

        v_h = v_ref[:, h * cp:(h + 1) * cp]                    # [TJ, Cp] bf16
        acc_ref[h] = corr * acc_ref[h] + jnp.dot(
            p.astype(jnp.bfloat16), v_h, preferred_element_type=jnp.float32)

    @pl.when(j == nj - 1)
    def _finalize():
        cols = []
        for h in range(heads):
            inv = pl.reciprocal(jnp.maximum(l_ref[h], 1e-20), approx=True)   # [TI, 1]
            cols.append(acc_ref[h] * inv)                                    # [TI, Cp]
        out = cols[0] if heads == 1 else jnp.concatenate(cols, axis=-1)      # [TI, H*Cp]
        out = out + bias_ref[...]
        if apply_relu:
            out = jnp.maximum(out, 0.0)
        out_ref[...] = out.astype(out_ref.dtype)               # single lane-dense store


def gat_attention(a_dst, a_src_t, v, adj_i8, bias_pad, *,
                  heads, cp, apply_relu, block_i, block_j):
    n_pad = v.shape[0]
    hcp = v.shape[1]
    ni, nj = n_pad // block_i, n_pad // block_j

    kernel = functools.partial(gat_attention_kernel,
                               heads=heads, cp=cp, apply_relu=apply_relu)
    cost = pl.CostEstimate(
        flops=int(2 * heads * n_pad * n_pad * cp + 12 * heads * n_pad * n_pad),
        transcendentals=int(heads * n_pad * n_pad),
        bytes_accessed=int(n_pad * n_pad                 # int8 adjacency
                           + ni * n_pad * hcp * 2        # bf16 values, re-read per row tile
                           + n_pad * hcp * 4             # f32 output
                           + 4 * n_pad * heads * 4))     # logits

    return pl.pallas_call(
        kernel,
        out_shape=jax.ShapeDtypeStruct((n_pad, hcp), jnp.float32),
        grid_spec=pltpu.PrefetchScalarGridSpec(
            num_scalar_prefetch=0,
            grid=(ni, nj),
            in_specs=[pl.BlockSpec((block_i, heads), lambda i, j: (i, 0)),
                      pl.BlockSpec((heads, block_j), lambda i, j: (0, j)),
                      pl.BlockSpec((block_j, hcp), lambda i, j: (j, 0)),
                      pl.BlockSpec((block_i, block_j), lambda i, j: (i, j)),
                      pl.BlockSpec((1, hcp), lambda i, j: (0, 0))],
            out_specs=pl.BlockSpec((block_i, hcp), lambda i, j: (i, 0)),
            scratch_shapes=[pltpu.VMEM((heads, block_i, 1), jnp.float32),
                            pltpu.VMEM((heads, block_i, 1), jnp.float32),
                            pltpu.VMEM((heads, block_i, cp), jnp.float32)]),
        compiler_params=pltpu.CompilerParams(
            dimension_semantics=("parallel", "arbitrary"),
            vmem_limit_bytes=VMEM_LIMIT_BYTES),
        cost_estimate=cost,
    )(a_dst, a_src_t, v, adj_i8, bias_pad)


# ----------------------------------------------------------------------------
# Model glue: per-layer driver, params, adjacency, forward
# ----------------------------------------------------------------------------

def gat_conv(x_pad, p, adj_i8, prev_pad, *, apply_relu, block):
    heads, c = p["heads"], p["out_channels"]
    cp = head_pad_dim(c, heads)

    w = pad_per_head(p["w"], heads, c, cp, axis=1)            # pad output cols per head
    if prev_pad is not None:
        ph, pc, pcp = prev_pad
        w = pad_per_head(w, ph, pc, pcp, axis=0)              # match padded input activations
    a_mat = build_att_matrix(p["att_src"], p["att_dst"], c, cp)
    bias_pad = pad_per_head(p["bias"].reshape(1, heads * c), heads, c, cp, axis=1)

    xw, alpha = gat_project(x_pad, w.astype(jnp.bfloat16), a_mat, block_rows=block)
    a_src_t = jnp.transpose(alpha[:, :heads])                 # [heads, n_pad]
    a_dst = alpha[:, heads:]                                  # [n_pad, heads]

    out = gat_attention(a_dst, a_src_t, xw, adj_i8, bias_pad,
                        heads=heads, cp=cp, apply_relu=apply_relu,
                        block_i=block, block_j=block)
    return out, (heads, c, cp)


def gat_model_forward(params, x, adj_i8, *, block=128):
    """Mirrors GATModel.forward in eval mode (dropout=identity, softmax=Identity)."""
    n = x.shape[0]
    n_pad = adj_i8.shape[0]
    x_pad = jnp.pad(x, ((0, n_pad - n), (0, 0)))
    prev_pad = None
    for li, p in enumerate(params):
        apply_relu = li < len(params) - 1        # F.relu fused into every layer but the last
        x_pad, prev_pad = gat_conv(x_pad, p, adj_i8, prev_pad,
                                   apply_relu=apply_relu, block=block)
        # F.dropout(p=0.0) / eval mode -> identity
    heads, c, cp = prev_pad
    out = x_pad[:n].reshape(n, heads, cp)[:, :, :c].reshape(n, heads * c)
    # softmax_fn = nn.Identity() (log_softmax_return=False)
    return out


def init_gat_params(key, num_features, hidden_channels, num_classes,
                    num_layers=2, heads=1):
    """Deterministic Glorot-style init matching GATConv parameter shapes."""
    dims = [(num_features, hidden_channels, heads)]
    for _ in range(num_layers - 2):
        dims.append((hidden_channels * heads, hidden_channels, heads))
    dims.append((hidden_channels * heads, num_classes, 1))     # last layer, heads=1

    params = []
    for (f_in, c_out, h) in dims:
        key, k_w, k_s, k_d = jax.random.split(key, 4)
        scale_w = (2.0 / (f_in + h * c_out)) ** 0.5
        scale_a = (2.0 / (1 + c_out)) ** 0.5
        params.append(dict(
            w=scale_w * jax.random.normal(k_w, (f_in, h * c_out), jnp.float32),
            att_src=scale_a * jax.random.normal(k_s, (h, c_out), jnp.float32),
            att_dst=scale_a * jax.random.normal(k_d, (h, c_out), jnp.float32),
            bias=jnp.zeros((h, c_out), jnp.float32),
            heads=h,
            out_channels=c_out,
        ))
    return params


def build_dense_adj_int8(edge_index, num_nodes, n_pad, add_self_loops=True):
    """adj[i, j] = 1 (int8) iff edge j -> i exists; zero-padded to [n_pad, n_pad]."""
    src, dst = edge_index[0], edge_index[1]
    adj = jnp.zeros((n_pad, n_pad), jnp.int8)
    adj = adj.at[dst, src].set(1)
    if add_self_loops:
        idx = jnp.arange(num_nodes)
        adj = adj.at[idx, idx].set(1)
    return adj


# ----------------------------------------------------------------------------
# Pure-JAX f32 reference (for validation)
# ----------------------------------------------------------------------------

def gat_model_reference(params, x, adj_f):
    n = x.shape[0]
    mask = (adj_f > 0.0)[:, :, None]                          # [i, j, 1]
    h_in = x
    for li, p in enumerate(params):
        heads, c = p["heads"], p["out_channels"]
        xw = h_in @ p["w"]                                    # [n, heads*c]
        xw_h = xw.reshape(n, heads, c)
        a_src = jnp.einsum("nhc,hc->nh", xw_h, p["att_src"])
        a_dst = jnp.einsum("nhc,hc->nh", xw_h, p["att_dst"])
        e = a_dst[:, None, :] + a_src[None, :, :]             # [i, j, h]
        e = jnp.where(e >= 0.0, e, NEG_SLOPE * e)
        e = jnp.where(mask, e, -MASK_BIG)
        e = e - jnp.max(e, axis=1, keepdims=True)
        pexp = jnp.exp(e) * mask
        denom = jnp.maximum(jnp.sum(pexp, axis=1, keepdims=True), 1e-20)
        attn = pexp / denom
        out = jnp.einsum("ijh,jhc->ihc", attn, xw_h) + p["bias"][None]
        out = out.reshape(n, heads * c)
        if li < len(params) - 1:
            out = jnp.maximum(out, 0.0)
        h_in = out
    return h_in


if __name__ == "__main__":
    key = jax.random.PRNGKey(0)

    # Small, deterministic problem (large enough to exercise a (2, 2) tile grid).
    num_nodes = 256
    num_features = 16
    hidden_channels = 16
    num_classes = 8
    heads = 2
    num_layers = 2
    block = 128

    k_x, k_e, k_p = jax.random.split(key, 3)
    x = jax.random.normal(k_x, (num_nodes, num_features), jnp.float32)

    # Deterministic edge_index: a ring graph plus random edges.
    ring_src = jnp.arange(num_nodes, dtype=jnp.int32)
    ring_dst = (ring_src + 1) % num_nodes
    rand_src = jax.random.randint(k_e, (4 * num_nodes,), 0, num_nodes, dtype=jnp.int32)
    rand_dst = jax.random.randint(jax.random.fold_in(k_e, 1), (4 * num_nodes,), 0,
                                  num_nodes, dtype=jnp.int32)
    edge_index = jnp.stack([jnp.concatenate([ring_src, rand_src]),
                            jnp.concatenate([ring_dst, rand_dst])], axis=0)

    n_pad = round_up(num_nodes, block)
    adj_i8 = build_dense_adj_int8(edge_index, num_nodes, n_pad, add_self_loops=True)

    params = init_gat_params(k_p, num_features, hidden_channels, num_classes,
                             num_layers=num_layers, heads=heads)

    out = gat_model_forward(params, x, adj_i8, block=block)
    out = jax.block_until_ready(out)
    assert out.shape == (num_nodes, num_classes)
    assert bool(jnp.all(jnp.isfinite(out)))

    # Validate against the pure-JAX f32 reference (kernel uses bf16 MXU operands,
    # so the tolerance is loose but still catches structural / masking bugs).
    ref = gat_model_reference(params, x,
                              adj_i8[:num_nodes, :num_nodes].astype(jnp.float32))
    max_err = float(jnp.max(jnp.abs(out - ref)))
    assert max_err < 0.15, f"max abs error {max_err}"

    print("KERNEL_OK")
</pallas_src>

<mosaic_0001>
module attributes {stable_mosaic.version = 11 : i64} {
  func.func @gat_project_kernel(%arg0: i32, %arg1: memref<128x16xf32, #tpu.memory_space<vmem>>, %arg2: memref<16x128xbf16, #tpu.memory_space<vmem>>, %arg3: memref<128x4xf32, #tpu.memory_space<vmem>>, %arg4: memref<128x128xbf16, #tpu.memory_space<vmem>>, %arg5: memref<128x4xf32, #tpu.memory_space<vmem>>) attributes {dimension_semantics = [#tpu.dimension_semantics<parallel>], iteration_bounds = array<i64: 2>, scalar_prefetch = 0 : i64, scratch_operands = 0 : i64, tpu.core_type = #tpu.core_type<tc>, window_params = [{transform_indices = @transform_0, window_bounds = array<i64: 128, 16>}, {pipeline_mode = #tpu.pipeline_mode<synchronous>, transform_indices = @transform_1, window_bounds = array<i64: 16, 128>}, {pipeline_mode = #tpu.pipeline_mode<synchronous>, transform_indices = @transform_2, window_bounds = array<i64: 128, 4>}, {transform_indices = @transform_3, window_bounds = array<i64: 128, 128>}, {transform_indices = @transform_4, window_bounds = array<i64: 128, 4>}]} {
    %c0 = arith.constant 0 : index
    %c0_0 = arith.constant 0 : index
    %0 = vector.load %arg1[%c0, %c0_0] : memref<128x16xf32, #tpu.memory_space<vmem>>, vector<128x16xf32>
    %1 = arith.truncf %0 : vector<128x16xf32> to vector<128x16xbf16>
    %c0_1 = arith.constant 0 : index
    %c0_2 = arith.constant 0 : index
    %2 = vector.load %arg2[%c0_1, %c0_2] : memref<16x128xbf16, #tpu.memory_space<vmem>>, vector<16x128xbf16>
    %cst = arith.constant dense<0.000000e+00> : vector<128x128xf32>
    %3 = tpu.matmul %1, %2, %cst {dimension_numbers = #tpu.dot_dimension_numbers<[1], [0], [0], [1], [0, 0, 1, 1], [], []>} : vector<128x16xbf16>, vector<16x128xbf16>, vector<128x128xf32> -> vector<128x128xf32>
    %c0_3 = arith.constant 0 : index
    %c0_4 = arith.constant 0 : index
    %4 = vector.load %arg3[%c0_3, %c0_4] : memref<128x4xf32, #tpu.memory_space<vmem>>, vector<128x4xf32>
    %cst_5 = arith.constant dense<0.000000e+00> : vector<128x4xf32>
    %5 = tpu.matmul %3, %4, %cst_5 {dimension_numbers = #tpu.dot_dimension_numbers<[1], [0], [0], [1], [0, 0, 1, 1], [], []>} : vector<128x128xf32>, vector<128x4xf32>, vector<128x4xf32> -> vector<128x4xf32>
    %6 = arith.truncf %3 : vector<128x128xf32> to vector<128x128xbf16>
    %c0_6 = arith.constant 0 : index
    %c0_7 = arith.constant 0 : index
    %7 = vector.load %arg4[%c0_6, %c0_7] : memref<128x128xbf16, #tpu.memory_space<vmem>>, vector<128x128xbf16>
    tpu.vector_store %arg4[%c0_6, %c0_7], %6 {strides = array<i32>} : memref<128x128xbf16, #tpu.memory_space<vmem>>, vector<128x128xbf16>,
    %c0_8 = arith.constant 0 : index
    %c0_9 = arith.constant 0 : index
    %8 = vector.load %arg5[%c0_8, %c0_9] : memref<128x4xf32, #tpu.memory_space<vmem>>, vector<128x4xf32>
    tpu.vector_store %arg5[%c0_8, %c0_9], %5 {strides = array<i32>} : memref<128x4xf32, #tpu.memory_space<vmem>>, vector<128x4xf32>,
    return
  }
  func.func @transform_0(%arg0: i32) -> (i32, i32) {
    %c0_i32 = arith.constant 0 : i32
    %c0_i32_0 = arith.constant 0 : i32
    return %arg0, %c0_i32 : i32, i32
  }
  func.func @transform_1(%arg0: i32) -> (i32, i32) {
    %c0_i32 = arith.constant 0 : i32
    %c0_i32_0 = arith.constant 0 : i32
    %c0_i32_1 = arith.constant 0 : i32
    return %c0_i32, %c0_i32_0 : i32, i32
  }
  func.func @transform_2(%arg0: i32) -> (i32, i32) {
    %c0_i32 = arith.constant 0 : i32
    %c0_i32_0 = arith.constant 0 : i32
    %c0_i32_1 = arith.constant 0 : i32
    return %c0_i32, %c0_i32_0 : i32, i32
  }
  func.func @transform_3(%arg0: i32) -> (i32, i32) {
    %c0_i32 = arith.constant 0 : i32
    %c0_i32_0 = arith.constant 0 : i32
    return %arg0, %c0_i32 : i32, i32
  }
  func.func @transform_4(%arg0: i32) -> (i32, i32) {
    %c0_i32 = arith.constant 0 : i32
    %c0_i32_0 = arith.constant 0 : i32
    return %arg0, %c0_i32 : i32, i32
  }
}

</mosaic_0001>

<llo_original>
// kernel: tpu_custom_call.1
$region0: #{tpu_custom_call.1}
  #allocation0 [shape = 'u32[]', space=smem, size = 0x4, offset = 0x4, fixed_abs, tag = 'smem constant byte address 0x4 - core index']
  #allocation1 [shape = 'u32[144,128]{1,0:T(1,128)}', space=vmem, size = 0x12000, scoped, tag = 'internal scratch']
  %s0 = inlined_call_operand.vmem [shape: f32[256,16], index: 0, kind: input, shape index: {}]
  %s1 = inlined_call_operand.vmem [shape: bf16[16,128], index: 1, kind: input, shape index: {}]
  %s2 = inlined_call_operand.vmem [shape: f32[128,4], index: 2, kind: input, shape index: {}]
  %s3 = inlined_call_operand.hbm [shape: bf16[256,128], index: 3, kind: output, shape index: {0}]
  %s4 = inlined_call_operand.vmem [shape: f32[256,4], index: 4, kind: output, shape index: {1}]
  %5 = xla_tuple %s3, %s4
  %s6 = sld [smem:[#allocation0]]
  $region53: #{tpu_custom_call.1} parent=0
    _
  %s8 = ssub.s32 1, %s6
  %s9 = scalar_select 0, %s8, %s6
  $region1: #{tpu_custom_call.1} parent=0
    #allocation2 [shape = 'u8[65536]{0}', space=vmem, size = 0x10000, scoped, tag = 'output window, operand 0']
    #allocation3 [shape = 's32[2]{0}', space=sflag, size = 0x8, scoped, tag = 'scoped memory for tpu_custom_call.1']
    %10 = vsyncpa [#allocation3], 0
    %s11 = scalar_lea.sflag [#allocation3], 1
    %12 = vsyncpa %s11, 0
    loop: start=0, step=1, limit=4
    $region2: #{tpu_custom_call.1} parent=1 // loop_pre_header
      _
    $region3: #{tpu_custom_call.1} parent=1 // loop_header
      %s14 = sphi 0, %s18
      %p15 = scmp.ge.s32.totalorder %s14, 4
      %s24 = sphi 0, %s26
      %s27 = sphi 0, %s24
      %s28 = sphi 0, %s27
      %s44 = sphi 0, %s28
      %s48 = sphi 0, %s48
      %s50 = sphi 0, %s48
      %s51 = sphi 0, %s50
      %s65 = sphi 0, %s51
      %s69 = sphi 0, %s69
      %s71 = sphi 0, %s69
      %s72 = sphi 0, %s71
      %s86 = sphi 0, %s72
      %s92 = sphi 0, %s94
      %s95 = sphi 0, %s92
      %s96 = sphi 0, %s95
      %s112 = sphi 0, %s96
      %s118 = sphi 0, %s120
      %s121 = sphi 0, %s118
      %s122 = sphi 0, %s121
      %s138 = sphi 0, %s122
    $region4: #{tpu_custom_call.1} parent=1 // loop_header_branch
      %17 = sbr.rel (%p15) target = $region8
    $region5: #{tpu_custom_call.1} parent=1 // loop_body
      %s19 = ssub.s32 %s14, 1
      %s20 = ssub.s32 %s14, 2
      %s21 = sadd.s32 %s14, 1
      %s22 = ssub.s32 %s14, %s21
      %p23 = scmp.eq.s32.totalorder %s22, 0
      %s25 = sadd.s32 %s24, 1
      %s26 = scalar_select %p23, %s24, %s25
      %p29 = pneg %p23
      %p30 = scmp.eq.s32.totalorder %s14, 1
      %p31 = por %p29, %p30
      %p32 = scmp.ne.s32.totalorder %s24, %s27
      %p33 = scmp.eq.s32.totalorder %s14, 0
      %p34 = por %p32, %p33
      %p35 = scmp.ne.s32.totalorder %s24, %s27
      %p36 = scmp.eq.s32.totalorder %s19, 1
      %p37 = por %p35, %p36
      %p38 = scmp.ne.s32.totalorder %s27, %s28
      %p39 = scmp.eq.s32.totalorder %s19, 0
      %p40 = por %p38, %p39
      %p41 = scmp.ne.s32.totalorder %s27, %s28
      %p42 = scmp.eq.s32.totalorder %s20, 1
      %p43 = por %p41, %p42
      %p45 = scmp.ne.s32.totalorder %s28, %s44
      %p46 = scmp.eq.s32.totalorder %s20, 0
      %p47 = por %p45, %p46
      %s49 = sadd.s32 %s48, 1
      %p52 = scmp.eq.s32.totalorder %s14, 1
      %p53 = scmp.ne.s32.totalorder %s48, %s50
      %p54 = scmp.eq.s32.totalorder %s14, 0
      %p55 = por %p53, %p54
      %p56 = scmp.ne.s32.totalorder %s48, %s50
      %p57 = scmp.eq.s32.totalorder %s19, 1
      %p58 = por %p56, %p57
      %p59 = scmp.ne.s32.totalorder %s50, %s51
      %p60 = scmp.eq.s32.totalorder %s19, 0
      %p61 = por %p59, %p60
      %p62 = scmp.ne.s32.totalorder %s50, %s51
      %p63 = scmp.eq.s32.totalorder %s20, 1
      %p64 = por %p62, %p63
      %p66 = scmp.ne.s32.totalorder %s51, %s65
      %p67 = scmp.eq.s32.totalorder %s20, 0
      %p68 = por %p66, %p67
      %s70 = sadd.s32 %s69, 1
      %p73 = scmp.eq.s32.totalorder %s14, 1
      %p74 = scmp.ne.s32.totalorder %s69, %s71
      %p75 = scmp.eq.s32.totalorder %s14, 0
      %p76 = por %p74, %p75
      %p77 = scmp.ne.s32.totalorder %s69, %s71
      %p78 = scmp.eq.s32.totalorder %s19, 1
      %p79 = por %p77, %p78
      %p80 = scmp.ne.s32.totalorder %s71, %s72
      %p81 = scmp.eq.s32.totalorder %s19, 0
      %p82 = por %p80, %p81
      %p83 = scmp.ne.s32.totalorder %s71, %s72
      %p84 = scmp.eq.s32.totalorder %s20, 1
      %p85 = por %p83, %p84
      %p87 = scmp.ne.s32.totalorder %s72, %s86
      %p88 = scmp.eq.s32.totalorder %s20, 0
      %p89 = por %p87, %p88
      %s90 = ssub.s32 %s14, %s21
      %p91 = scmp.eq.s32.totalorder %s90, 0
      %s93 = sadd.s32 %s92, 1
      %s94 = scalar_select %p91, %s92, %s93
      %p97 = pneg %p91
      %p98 = scmp.eq.s32.totalorder %s14, 1
      %p99 = por %p97, %p98
      %p100 = scmp.ne.s32.totalorder %s92, %s95
      %p101 = scmp.eq.s32.totalorder %s14, 0
      %p102 = por %p100, %p101
      %p103 = scmp.ne.s32.totalorder %s92, %s95
      %p104 = scmp.eq.s32.totalorder %s19, 1
      %p105 = por %p103, %p104
      %p106 = scmp.ne.s32.totalorder %s95, %s96
      %p107 = scmp.eq.s32.totalorder %s19, 0
      %p108 = por %p106, %p107
      %p109 = scmp.ne.s32.totalorder %s95, %s96
      %p110 = scmp.eq.s32.totalorder %s20, 1
      %p111 = por %p109, %p110
      %p113 = scmp.ne.s32.totalorder %s96, %s112
      %p114 = scmp.eq.s32.totalorder %s20, 0
      %p115 = por %p113, %p114
      %s116 = ssub.s32 %s14, %s21
      %p117 = scmp.eq.s32.totalorder %s116, 0
      %s119 = sadd.s32 %s118, 1
      %s120 = scalar_select %p117, %s118, %s119
      %p123 = pneg %p117
      %p124 = scmp.eq.s32.totalorder %s14, 1
      %p125 = por %p123, %p124
      %p126 = scmp.ne.s32.totalorder %s118, %s121
      %p127 = scmp.eq.s32.totalorder %s14, 0
      %p128 = por %p126, %p127
      %p129 = scmp.ne.s32.totalorder %s118, %s121
      %p130 = scmp.eq.s32.totalorder %s19, 1
      %p131 = por %p129, %p130
      %p132 = scmp.ne.s32.totalorder %s121, %s122
      %p133 = scmp.eq.s32.totalorder %s19, 0
      %p134 = por %p132, %p133
      %p135 = scmp.ne.s32.totalorder %s121, %s122
      %p136 = scmp.eq.s32.totalorder %s20, 1
      %p137 = por %p135, %p136
      %p139 = scmp.ne.s32.totalorder %s122, %s138
      %p140 = scmp.eq.s32.totalorder %s20, 0
      %p141 = por %p139, %p140
      %p142 = scmp.le.s32.totalorder 1, %s14
      %p143 = scmp.lt.s32.totalorder %s14, 3
      %p144 = pnand %p142, %p143
      %p145 = pneg %p144
      // Predicated region
      $region9: #{tpu_custom_call.1} parent=5 // pred_check
        _
      $region10: #{tpu_custom_call.1} parent=5 // pred_check_branch
        %147 = sbr.rel (%p144) target = $region12
      $region11: #{tpu_custom_call.1} parent=5 // pred_region
        %s148 = ssub.s32 %s14, 1
        // Predicated region
        $region13: #{tpu_custom_call.1} parent=11 // pred_check
          %p149 = pneg %p61
        $region14: #{tpu_custom_call.1} parent=11 // pred_check_branch
          %151 = sbr.rel (%p149) target = $region16
        $region15: #{tpu_custom_call.1} parent=11 // pred_region
          _
        $region16: #{tpu_custom_call.1} parent=11 // pred_fallthru
          _
        // Predicated region
        $region17: #{tpu_custom_call.1} parent=11 // pred_check
          %p152 = pneg %p82
        $region18: #{tpu_custom_call.1} parent=11 // pred_check_branch
          %154 = sbr.rel (%p152) target = $region20
        $region19: #{tpu_custom_call.1} parent=11 // pred_region
          _
        $region20: #{tpu_custom_call.1} parent=11 // pred_fallthru
          _
      $region12: #{tpu_custom_call.1} parent=5 // pred_fallthru
        _
      %p155 = scmp.lt.s32.totalorder %s14, 2
      // Predicated region
      $region21: #{tpu_custom_call.1} parent=5 // pred_check
        %p156 = pneg %p155
      $region22: #{tpu_custom_call.1} parent=5 // pred_check_branch
        %158 = sbr.rel (%p156) target = $region24
      $region23: #{tpu_custom_call.1} parent=5 // pred_region
        // Predicated region
        $region25: #{tpu_custom_call.1} parent=23 // pred_check
          %p159 = pneg %p34
        $region26: #{tpu_custom_call.1} parent=23 // pred_check_branch
          %161 = sbr.rel (%p159) target = $region28
        $region27: #{tpu_custom_call.1} parent=23 // pred_region
          %s162 = smul.u32 16, %s14
          %p163 = scmp.lt.s32.totalorder %s162, 31
          %s164 = scalar_select %p163, %s162, 31
          %s165 = smul.addr %s164, 8
          %s166 = scalar_lea.vmem %s0, %s165
          %s167 = smul.u32 16, %s14
        $region28: #{tpu_custom_call.1} parent=23 // pred_fallthru
          _
      $region24: #{tpu_custom_call.1} parent=5 // pred_fallthru
        _
      %p168 = scmp.le.s32.totalorder 1, %s14
      %p169 = scmp.lt.s32.totalorder %s14, 3
      %p170 = pnand %p168, %p169
      %p171 = pneg %p170
      // Predicated region
      $region29: #{tpu_custom_call.1} parent=5 // pred_check
        _
      $region30: #{tpu_custom_call.1} parent=5 // pred_check_branch
        %173 = sbr.rel (%p170) target = $region32
      $region31: #{tpu_custom_call.1} parent=5 // pred_region
        %s174 = ssub.s32 %s14, 1
        %s175 = smul.u32 16, %s19
        %p176 = scmp.lt.s32.totalorder %s175, 31
        %s177 = scalar_select %p176, %s175, 31
        %s178 = smul.addr %s177, 8
        %s179 = scalar_lea.vmem %s0, %s178
        %p180 = pneg %p40
        %p181 = pneg %p37
        %p182 = pneg %p61
        %p183 = pneg %p58
        %p184 = pneg %p82
        %p185 = pneg %p79
        %p186 = pneg %p108
        %p187 = pneg %p105
        %s188 = sand.u32 %s95, 1
        %s189 = scalar_lea.sflag [#allocation3], %s188
        %s190 = sand.u32 %s95, 1
        %s191 = smul.addr %s190, 64
        %s192 = scalar_lea.vmem [#allocation2], %s191
        %p193 = pneg %p134
        %p194 = pneg %p131
        %s195 = smul.u32 16, %s19
        %p196 = scmp.lt.s32.totalorder %s195, 31
        %s197 = scalar_select %p196, %s195, 31
        %s198 = smul.addr %s197, 8
        %s199 = scalar_lea.vmem %s4, %s198
        %s200 = smul.u32 16, %s19
        %p201 = scmp.lt.s32.totalorder %s200, 31
        %s202 = scalar_select %p201, %s200, 31
        %s203 = smul.addr %s202, 8
        %s204 = scalar_lea.vmem %s0, %s203
        %s205 = smul.u32 16, %s19
        %s206 = smul.u32 16, %s19
        %s207 = smul.u32 16, %s19
        %p208 = scmp.lt.s32.totalorder %s207, 31
        %s209 = scalar_select %p208, %s207, 31
        %s210 = smul.addr %s209, 8
        %s211 = scalar_lea.vmem %s4, %s210
        %s212 = smul.u32 16, %s19
        %v214 = vld [vmem:[%s204] sm:$0xff]
        %v215 = vld [vmem:[%s204 + $0x8] sm:$0xff]
        %v216 = vld [vmem:[%s204 + $0x10] sm:$0xff]
        %v217 = vld [vmem:[%s204 + $0x18] sm:$0xff]
        %v218 = vld [vmem:[%s204 + $0x20] sm:$0xff]
        %v219 = vld [vmem:[%s204 + $0x28] sm:$0xff]
        %v220 = vld [vmem:[%s204 + $0x30] sm:$0xff]
        %v221 = vld [vmem:[%s204 + $0x38] sm:$0xff]
        %v222 = vld [vmem:[%s204 + $0x40] sm:$0xff]
        %v223 = vld [vmem:[%s204 + $0x48] sm:$0xff]
        %v224 = vld [vmem:[%s204 + $0x50] sm:$0xff]
        %v225 = vld [vmem:[%s204 + $0x58] sm:$0xff]
        %v226 = vld [vmem:[%s204 + $0x60] sm:$0xff]
        %v227 = vld [vmem:[%s204 + $0x68] sm:$0xff]
        %v228 = vld [vmem:[%s204 + $0x70] sm:$0xff]
        %v229 = vld [vmem:[%s204 + $0x78] sm:$0xff]
        %v230 = vpack.c.bf16 %v215, %v214
        %v231 = vpack.c.bf16 %v217, %v216
        %v232 = vpack.c.bf16 %v219, %v218
        %v233 = vpack.c.bf16 %v221, %v220
        %v234 = vpack.c.bf16 %v223, %v222
        %v235 = vpack.c.bf16 %v225, %v224
        %v236 = vpack.c.bf16 %v227, %v226
        %v237 = vpack.c.bf16 %v229, %v228
        %v238 = vld [vmem:[%s1] sm:$0xf]
        %v239 = vld [vmem:[%s1 + $0x4] sm:$0xf]
        %v242 = vunpack.c.l.b16 %v238
        %v243 = vunpack.c.l.b16 %v239
        %v244 = vpack.c.b16 %v243, %v242
        %vm246 = vcmask 130048
        %v248 = vsel %vm246, %v230, 0
        %v251 = vsel %vm246, %v231, 0
        %v254 = vsel %vm246, %v232, 0
        %v257 = vsel %vm246, %v233, 0
        %v260 = vsel %vm246, %v234, 0
        %v263 = vsel %vm246, %v235, 0
        %v266 = vsel %vm246, %v236, 0
        %v269 = vsel %vm246, %v237, 0
        %271 = vmatprep.subr.bf16.mxu0 0
        %272 = vmatpush1.bf16.msra.mxu0 %v244
        %273 = vmatprep.subr.bf16.mxu0 0
        %274 = vmatpush1.bf16.msra.mxu0 0
        %275 = vmatprep.subr.bf16.mxu0 0
        %276 = vmatpush1.bf16.msra.mxu0 0
        %277 = vmatprep.subr.bf16.mxu0 0
        %278 = vmatpush1.bf16.msra.mxu0 0
        %279 = vmatprep.subr.bf16.mxu0 0
        %280 = vmatpush1.bf16.msra.mxu0 0
        %281 = vmatprep.subr.bf16.mxu0 0
        %282 = vmatpush1.bf16.msra.mxu0 0
        %283 = vmatprep.subr.bf16.mxu0 0
        %284 = vmatpush1.bf16.msra.mxu0 0
        %285 = vmatprep.subr.bf16.mxu0 0
        %286 = vmatpush1.bf16.msra.mxu0 0
        %287 = vmatprep.subr.bf16.mxu0 0
        %288 = vmatpush1.bf16.msra.mxu0 0
        %289 = vmatprep.subr.bf16.mxu0 0
        %290 = vmatpush1.bf16.msra.mxu0 0
        %291 = vmatprep.subr.bf16.mxu0 0
        %292 = vmatpush1.bf16.msra.mxu0 0
        %293 = vmatprep.subr.bf16.mxu0 0
        %294 = vmatpush1.bf16.msra.mxu0 0
        %295 = vmatprep.subr.bf16.mxu0 0
        %296 = vmatpush1.bf16.msra.mxu0 0
        %297 = vmatprep.subr.bf16.mxu0 0
        %298 = vmatpush1.bf16.msra.mxu0 0
        %299 = vmatprep.subr.bf16.mxu0 0
        %300 = vmatpush1.bf16.msra.mxu0 0
        %301 = vmatprep.subr.bf16.mxu0 0
        %302 = vmatpush1.bf16.msra.mxu0 0
        %303 = vmatprep.mubr.bf16.mxu0 0
        %304 = vmatmul.mubr.bf16.gmra.mrb[0].mxu0 %v248
        %v305 = vpop.f32.mrb[0].mxu0
        %v306 = vadd.f32 0.0, %v305
        %v307 = vpop.f32.mrb[0].mxu0
        %v308 = vpop.f32.mrb[0].mxu0
        %v309 = vadd.f32 0.0, %v308
        %v310 = vpop.f32.mrb[0].mxu0
        %311 = vmatprep.mubr.bf16.mxu0 0
        %312 = vmatmul.mubr.bf16.gmra.mrb[0].mxu0 %v251
        %v313 = vpop.f32.mrb[0].mxu0
        %v314 = vadd.f32 0.0, %v313
        %v315 = vpop.f32.mrb[0].mxu0
        %v316 = vpop.f32.mrb[0].mxu0
        %v317 = vadd.f32 0.0, %v316
        %v318 = vpop.f32.mrb[0].mxu0
        %319 = vmatprep.mubr.bf16.mxu0 0
        %320 = vmatmul.mubr.bf16.gmra.mrb[0].mxu0 %v254
        %v321 = vpop.f32.mrb[0].mxu0
        %v322 = vadd.f32 0.0, %v321
        %v323 = vpop.f32.mrb[0].mxu0
        %v324 = vpop.f32.mrb[0].mxu0
        %v325 = vadd.f32 0.0, %v324
        %v326 = vpop.f32.mrb[0].mxu0
        %327 = vmatprep.mubr.bf16.mxu0 0
        %328 = vmatmul.mubr.bf16.gmra.mrb[0].mxu0 %v257
        %v329 = vpop.f32.mrb[0].mxu0
        %v330 = vadd.f32 0.0, %v329
        %v331 = vpop.f32.mrb[0].mxu0
        %v332 = vpop.f32.mrb[0].mxu0
        %v333 = vadd.f32 0.0, %v332
        %v334 = vpop.f32.mrb[0].mxu0
        %335 = vmatprep.mubr.bf16.mxu0 0
        %336 = vmatmul.mubr.bf16.gmra.mrb[0].mxu0 %v260
        %v337 = vpop.f32.mrb[0].mxu0
        %v338 = vadd.f32 0.0, %v337
        %v339 = vpop.f32.mrb[0].mxu0
        %v340 = vpop.f32.mrb[0].mxu0
        %v341 = vadd.f32 0.0, %v340
        %v342 = vpop.f32.mrb[0].mxu0
        %343 = vmatprep.mubr.bf16.mxu0 0
        %344 = vmatmul.mubr.bf16.gmra.mrb[0].mxu0 %v263
        %v345 = vpop.f32.mrb[0].mxu0
        %v346 = vadd.f32 0.0, %v345
        %v347 = vpop.f32.mrb[0].mxu0
        %v348 = vpop.f32.mrb[0].mxu0
        %v349 = vadd.f32 0.0, %v348
        %v350 = vpop.f32.mrb[0].mxu0
        %351 = vmatprep.mubr.bf16.mxu0 0
        %352 = vmatmul.mubr.bf16.gmra.mrb[0].mxu0 %v266
        %v353 = vpop.f32.mrb[0].mxu0
        %v354 = vadd.f32 0.0, %v353
        %v355 = vpop.f32.mrb[0].mxu0
        %v356 = vpop.f32.mrb[0].mxu0
        %v357 = vadd.f32 0.0, %v356
        %v358 = vpop.f32.mrb[0].mxu0
        %359 = vmatprep.mubr.bf16.mxu0 0
        %360 = vmatmul.mubr.bf16.gmra.mrb[0].mxu0 %v269
        %v361 = vpop.f32.mrb[0].mxu0
        %v362 = vadd.f32 0.0, %v361
        %v363 = vpop.f32.mrb[0].mxu0
        %v364 = vpop.f32.mrb[0].mxu0
        %v365 = vadd.f32 0.0, %v364
        %v366 = vpop.f32.mrb[0].mxu0
        %367 = vdwg.mxu0
        %v368 = vld [vmem:[%s2] sm:$0xff]
        %v369 = vld [vmem:[%s2 + $0x8] sm:$0xff]
        %v370 = vld [vmem:[%s2 + $0x10] sm:$0xff]
        %v371 = vld [vmem:[%s2 + $0x18] sm:$0xff]
        %v372 = vld [vmem:[%s2 + $0x20] sm:$0xff]
        %v373 = vld [vmem:[%s2 + $0x28] sm:$0xff]
        %v374 = vld [vmem:[%s2 + $0x30] sm:$0xff]
        %v375 = vld [vmem:[%s2 + $0x38] sm:$0xff]
        %v376 = vld [vmem:[%s2 + $0x40] sm:$0xff]
        %v377 = vld [vmem:[%s2 + $0x48] sm:$0xff]
        %v378 = vld [vmem:[%s2 + $0x50] sm:$0xff]
        %v379 = vld [vmem:[%s2 + $0x58] sm:$0xff]
        %v380 = vld [vmem:[%s2 + $0x60] sm:$0xff]
        %v381 = vld [vmem:[%s2 + $0x68] sm:$0xff]
        %v382 = vld [vmem:[%s2 + $0x70] sm:$0xff]
        %v383 = vld [vmem:[%s2 + $0x78] sm:$0xff]
        %384 = vmatprep.subr.mxu0 0.0
        %385 = vmatpush1.msra.mxu0 %v368
        %386 = vmatprep.subr.mxu0 0.0
        %387 = vmatpush1.msra.mxu0 %v369
        %388 = vmatprep.subr.mxu0 0.0
        %389 = vmatpush1.msra.mxu0 %v370
        %390 = vmatprep.subr.mxu0 0.0
        %391 = vmatpush1.msra.mxu0 %v371
        %392 = vmatprep.subr.mxu0 0.0
        %393 = vmatpush1.msra.mxu0 %v372
        %394 = vmatprep.subr.mxu0 0.0
        %395 = vmatpush1.msra.mxu0 %v373
        %396 = vmatprep.subr.mxu0 0.0
        %397 = vmatpush1.msra.mxu0 %v374
        %398 = vmatprep.subr.mxu0 0.0
        %399 = vmatpush1.msra.mxu0 %v375
        %400 = vmatprep.subr.mxu0 0.0
        %401 = vmatpush1.msra.mxu0 %v376
        %402 = vmatprep.subr.mxu0 0.0
        %403 = vmatpush1.msra.mxu0 %v377
        %404 = vmatprep.subr.mxu0 0.0
        %405 = vmatpush1.msra.mxu0 %v378
        %406 = vmatprep.subr.mxu0 0.0
        %407 = vmatpush1.msra.mxu0 %v379
        %408 = vmatprep.subr.mxu0 0.0
        %409 = vmatpush1.msra.mxu0 %v380
        %410 = vmatprep.subr.mxu0 0.0
        %411 = vmatpush1.msra.mxu0 %v381
        %412 = vmatprep.subr.mxu0 0.0
        %413 = vmatpush1.msra.mxu0 %v382
        %414 = vmatprep.subr.mxu0 0.0
        %415 = vmatpush1.msra.mxu0 %v383
        %416 = vmatprep.subr.mxu0 0.0
        %417 = vmatpush1.msra.mxu0 0.0
        %418 = vmatprep.subr.mxu0 0.0
        %419 = vmatpush1.msra.mxu0 0.0
        %420 = vmatprep.subr.mxu0 0.0
        %421 = vmatpush1.msra.mxu0 0.0
        %422 = vmatprep.subr.mxu0 0.0
        %423 = vmatpush1.msra.mxu0 0.0
        %424 = vmatprep.subr.mxu0 0.0
        %425 = vmatpush1.msra.mxu0 0.0
        %426 = vmatprep.subr.mxu0 0.0
        %427 = vmatpush1.msra.mxu0 0.0
        %428 = vmatprep.subr.mxu0 0.0
        %429 = vmatpush1.msra.mxu0 0.0
        %430 = vmatprep.subr.mxu0 0.0
        %431 = vmatpush1.msra.mxu0 0.0
        %432 = vmatprep.subr.mxu0 0.0
        %433 = vmatpush1.msra.mxu0 0.0
        %434 = vmatprep.subr.mxu0 0.0
        %435 = vmatpush1.msra.mxu0 0.0
        %436 = vmatprep.subr.mxu0 0.0
        %437 = vmatpush1.msra.mxu0 0.0
        %438 = vmatprep.subr.mxu0 0.0
        %439 = vmatpush1.msra.mxu0 0.0
        %440 = vmatprep.subr.mxu0 0.0
        %441 = vmatpush1.msra.mxu0 0.0
        %442 = vmatprep.subr.mxu0 0.0
        %443 = vmatpush1.msra.mxu0 0.0
        %444 = vmatprep.subr.mxu0 0.0
        %445 = vmatpush1.msra.mxu0 0.0
        %446 = vmatprep.subr.mxu0 0.0
        %447 = vmatpush1.msra.mxu0 0.0
        %448 = vmatprep.mubr.f32.mxu0 0.0
        %449 = vmatmul.mubr.f32.gmra.mrb[0].mxu0 %v306
        %v450 = vpop.f32.mrb[0].mxu0
        %v451 = vadd.f32 0.0, %v450
        %v452 = vpop.f32.mrb[0].mxu0
        %453 = vmatprep.mubr.f32.mxu0 0.0
        %454 = vmatmul.mubr.f32.gmra.mrb[0].mxu0 %v309
        %v455 = vpop.f32.mrb[0].mxu0
        %v456 = vadd.f32 0.0, %v455
        %v457 = vpop.f32.mrb[0].mxu0
        %458 = vmatprep.mubr.f32.mxu0 0.0
        %459 = vmatmul.mubr.f32.gmra.mrb[0].mxu0 %v314
        %v460 = vpop.f32.mrb[0].mxu0
        %v461 = vadd.f32 0.0, %v460
        %v462 = vpop.f32.mrb[0].mxu0
        %463 = vmatprep.mubr.f32.mxu0 0.0
        %464 = vmatmul.mubr.f32.gmra.mrb[0].mxu0 %v317
        %v465 = vpop.f32.mrb[0].mxu0
        %v466 = vadd.f32 0.0, %v465
        %v467 = vpop.f32.mrb[0].mxu0
        %468 = vmatprep.mubr.f32.mxu0 0.0
        %469 = vmatmul.mubr.f32.gmra.mrb[0].mxu0 %v322
        %v470 = vpop.f32.mrb[0].mxu0
        %v471 = vadd.f32 0.0, %v470
        %v472 = vpop.f32.mrb[0].mxu0
        %473 = vmatprep.mubr.f32.mxu0 0.0
        %474 = vmatmul.mubr.f32.gmra.mrb[0].mxu0 %v325
        %v475 = vpop.f32.mrb[0].mxu0
        %v476 = vadd.f32 0.0, %v475
        %v477 = vpop.f32.mrb[0].mxu0
        %478 = vmatprep.mubr.f32.mxu0 0.0
        %479 = vmatmul.mubr.f32.gmra.mrb[0].mxu0 %v330
        %v480 = vpop.f32.mrb[0].mxu0
        %v481 = vadd.f32 0.0, %v480
        %v482 = vpop.f32.mrb[0].mxu0
        %483 = vmatprep.mubr.f32.mxu0 0.0
        %484 = vmatmul.mubr.f32.gmra.mrb[0].mxu0 %v333
        %v485 = vpop.f32.mrb[0].mxu0
        %v486 = vadd.f32 0.0, %v485
        %v487 = vpop.f32.mrb[0].mxu0
        %488 = vmatprep.mubr.f32.mxu0 0.0
        %489 = vmatmul.mubr.f32.gmra.mrb[0].mxu0 %v338
        %v490 = vpop.f32.mrb[0].mxu0
        %v491 = vadd.f32 0.0, %v490
        %v492 = vpop.f32.mrb[0].mxu0
        %493 = vmatprep.mubr.f32.mxu0 0.0
        %494 = vmatmul.mubr.f32.gmra.mrb[0].mxu0 %v341
        %v495 = vpop.f32.mrb[0].mxu0
        %v496 = vadd.f32 0.0, %v495
        %v497 = vpop.f32.mrb[0].mxu0
        %498 = vmatprep.mubr.f32.mxu0 0.0
        %499 = vmatmul.mubr.f32.gmra.mrb[0].mxu0 %v346
        %v500 = vpop.f32.mrb[0].mxu0
        %v501 = vadd.f32 0.0, %v500
        %v502 = vpop.f32.mrb[0].mxu0
        %503 = vmatprep.mubr.f32.mxu0 0.0
        %504 = vmatmul.mubr.f32.gmra.mrb[0].mxu0 %v349
        %v505 = vpop.f32.mrb[0].mxu0
        %v506 = vadd.f32 0.0, %v505
        %v507 = vpop.f32.mrb[0].mxu0
        %508 = vmatprep.mubr.f32.mxu0 0.0
        %509 = vmatmul.mubr.f32.gmra.mrb[0].mxu0 %v354
        %v510 = vpop.f32.mrb[0].mxu0
        %v511 = vadd.f32 0.0, %v510
        %v512 = vpop.f32.mrb[0].mxu0
        %513 = vmatprep.mubr.f32.mxu0 0.0
        %514 = vmatmul.mubr.f32.gmra.mrb[0].mxu0 %v357
        %v515 = vpop.f32.mrb[0].mxu0
        %v516 = vadd.f32 0.0, %v515
        %v517 = vpop.f32.mrb[0].mxu0
        %518 = vmatprep.mubr.f32.mxu0 0.0
        %519 = vmatmul.mubr.f32.gmra.mrb[0].mxu0 %v362
        %v520 = vpop.f32.mrb[0].mxu0
        %v521 = vadd.f32 0.0, %v520
        %v522 = vpop.f32.mrb[0].mxu0
        %523 = vmatprep.mubr.f32.mxu0 0.0
        %524 = vmatmul.mubr.f32.gmra.mrb[0].mxu0 %v365
        %v525 = vpop.f32.mrb[0].mxu0
        %v526 = vadd.f32 0.0, %v525
        %v527 = vpop.f32.mrb[0].mxu0
        %528 = vdwg.mxu0
        %v529 = vpack.c.bf16 %v309, %v306
        %v530 = vpack.c.bf16 %v317, %v314
        %v531 = vpack.c.bf16 %v325, %v322
        %v532 = vpack.c.bf16 %v333, %v330
        %v533 = vpack.c.bf16 %v341, %v338
        %v534 = vpack.c.bf16 %v349, %v346
        %v535 = vpack.c.bf16 %v357, %v354
        %v536 = vpack.c.bf16 %v365, %v362
        %v545 = vunpack.c.l.b16 %v529
        %v546 = vunpack.c.h.b16 %v529
        %v547 = vunpack.c.l.b16 %v530
        %v548 = vunpack.c.h.b16 %v530
        %v549 = vunpack.c.l.b16 %v531
        %v550 = vunpack.c.h.b16 %v531
        %v551 = vunpack.c.l.b16 %v532
        %v552 = vunpack.c.h.b16 %v532
        %v553 = vunpack.c.l.b16 %v533
        %v554 = vunpack.c.h.b16 %v533
        %v555 = vunpack.c.l.b16 %v534
        %v556 = vunpack.c.h.b16 %v534
        %v557 = vunpack.c.l.b16 %v535
        %v558 = vunpack.c.h.b16 %v535
        %v559 = vunpack.c.l.b16 %v536
        %v560 = vunpack.c.h.b16 %v536
        %v561 = vpack.c.b16 %v545, %v545
        %v562 = vpack.c.b16 %v546, %v546
        %v563 = vpack.c.b16 %v547, %v547
        %v564 = vpack.c.b16 %v548, %v548
        %v565 = vpack.c.b16 %v549, %v549
        %v566 = vpack.c.b16 %v550, %v550
        %v567 = vpack.c.b16 %v551, %v551
        %v568 = vpack.c.b16 %v552, %v552
        %v569 = vpack.c.b16 %v553, %v553
        %v570 = vpack.c.b16 %v554, %v554
        %v571 = vpack.c.b16 %v555, %v555
        %v572 = vpack.c.b16 %v556, %v556
        %v573 = vpack.c.b16 %v557, %v557
        %v574 = vpack.c.b16 %v558, %v558
        %v575 = vpack.c.b16 %v559, %v559
        %v576 = vpack.c.b16 %v560, %v560
        %593 = vst [vmem:[%s192] sm:$0xf] %v561
        %594 = vst [vmem:[%s192 + $0x4] sm:$0xf] %v562
        %595 = vst [vmem:[%s192 + $0x8] sm:$0xf] %v563
        %596 = vst [vmem:[%s192 + $0xc] sm:$0xf] %v564
        %597 = vst [vmem:[%s192 + $0x10] sm:$0xf] %v565
        %598 = vst [vmem:[%s192 + $0x14] sm:$0xf] %v566
        %599 = vst [vmem:[%s192 + $0x18] sm:$0xf] %v567
        %600 = vst [vmem:[%s192 + $0x1c] sm:$0xf] %v568
        %601 = vst [vmem:[%s192 + $0x20] sm:$0xf] %v569
        %602 = vst [vmem:[%s192 + $0x24] sm:$0xf] %v570
        %603 = vst [vmem:[%s192 + $0x28] sm:$0xf] %v571
        %604 = vst [vmem:[%s192 + $0x2c] sm:$0xf] %v572
        %605 = vst [vmem:[%s192 + $0x30] sm:$0xf] %v573
        %606 = vst [vmem:[%s192 + $0x34] sm:$0xf] %v574
        %607 = vst [vmem:[%s192 + $0x38] sm:$0xf] %v575
        %608 = vst [vmem:[%s192 + $0x3c] sm:$0xf] %v576
        %vm609 = vcmask 31744
        %610 = vst.msk [vmem:[%s211] sm:$0xff] %vm609, %v451
        %611 = vst.msk [vmem:[%s211 + $0x8] sm:$0xff] %vm609, %v456
        %612 = vst.msk [vmem:[%s211 + $0x10] sm:$0xff] %vm609, %v461
        %613 = vst.msk [vmem:[%s211 + $0x18] sm:$0xff] %vm609, %v466
        %614 = vst.msk [vmem:[%s211 + $0x20] sm:$0xff] %vm609, %v471
        %615 = vst.msk [vmem:[%s211 + $0x28] sm:$0xff] %vm609, %v476
        %616 = vst.msk [vmem:[%s211 + $0x30] sm:$0xff] %vm609, %v481
        %617 = vst.msk [vmem:[%s211 + $0x38] sm:$0xff] %vm609, %v486
        %618 = vst.msk [vmem:[%s211 + $0x40] sm:$0xff] %vm609, %v491
        %619 = vst.msk [vmem:[%s211 + $0x48] sm:$0xff] %vm609, %v496
        %620 = vst.msk [vmem:[%s211 + $0x50] sm:$0xff] %vm609, %v501
        %621 = vst.msk [vmem:[%s211 + $0x58] sm:$0xff] %vm609, %v506
        %622 = vst.msk [vmem:[%s211 + $0x60] sm:$0xff] %vm609, %v511
        %623 = vst.msk [vmem:[%s211 + $0x68] sm:$0xff] %vm609, %v516
        %624 = vst.msk [vmem:[%s211 + $0x70] sm:$0xff] %vm609, %v521
        %625 = vst.msk [vmem:[%s211 + $0x78] sm:$0xff] %vm609, %v526
        %s626 = sand.u32 %s95, 1
        %s627 = scalar_lea.sflag [#allocation3], %s626
        %s628 = sand.u32 %s95, 1
        %s629 = smul.addr %s628, 64
        %s630 = scalar_lea.vmem [#allocation2], %s629
        %s631 = smul.u32 16, %s19
        %p632 = scmp.lt.s32.totalorder %s631, 31
        %s633 = scalar_select %p632, %s631, 31
        %s634 = smul.addr %s633, 8
        %s635 = scalar_lea.vmem %s4, %s634
        // Predicated region
        $region33: #{tpu_custom_call.1} parent=31 // pred_check
          %p636 = pneg %p105
        $region34: #{tpu_custom_call.1} parent=31 // pred_check_branch
          %638 = sbr.rel (%p636) target = $region36
        $region35: #{tpu_custom_call.1} parent=31 // pred_region
          %s639 = smul.u32 16, %s19
          %s641 = ssub.s32 1024, 1024
          %642 = vsyncadd %s627, %s641
          %s643 = smul.addr %s639, 64
          %s644 = scalar_lea.hbm %s3, %s643
          %s645 = sshll.u32 %s630, 4
          %s646 = int_to_ptr.vmem [resolvable:$true] %s645
          %651 = dma.vmem_to_hbm [thread:$0]  %s646, 1024, %s644, %s627, 64, 64, 4
        $region36: #{tpu_custom_call.1} parent=31 // pred_fallthru
          _
        // Predicated region
        $region37: #{tpu_custom_call.1} parent=31 // pred_check
          %p652 = pneg %p131
        $region38: #{tpu_custom_call.1} parent=31 // pred_check_branch
          %654 = sbr.rel (%p652) target = $region40
        $region39: #{tpu_custom_call.1} parent=31 // pred_region
          %s655 = smul.u32 16, %s19
        $region40: #{tpu_custom_call.1} parent=31 // pred_fallthru
          _
      $region32: #{tpu_custom_call.1} parent=5 // pred_fallthru
        _
      %p656 = scmp.le.s32.totalorder 2, %s14
      // Predicated region
      $region41: #{tpu_custom_call.1} parent=5 // pred_check
        %p657 = pneg %p656
      $region42: #{tpu_custom_call.1} parent=5 // pred_check_branch
        %659 = sbr.rel (%p657) target = $region44
      $region43: #{tpu_custom_call.1} parent=5 // pred_region
        %s660 = ssub.s32 %s14, 2
        // Predicated region
        $region45: #{tpu_custom_call.1} parent=43 // pred_check
          %p661 = pneg %p111
        $region46: #{tpu_custom_call.1} parent=43 // pred_check_branch
          %663 = sbr.rel (%p661) target = $region48
        $region47: #{tpu_custom_call.1} parent=43 // pred_region
          %s664 = sand.u32 %s96, 1
          %s665 = scalar_lea.sflag [#allocation3], %s664
          %s666 = sand.u32 %s96, 1
          %s667 = smul.addr %s666, 64
          %s668 = scalar_lea.vmem [#allocation2], %s667
          %669 = dma.done %s665, 1024
        $region48: #{tpu_custom_call.1} parent=43 // pred_fallthru
          _
        // Predicated region
        $region49: #{tpu_custom_call.1} parent=43 // pred_check
          %p670 = pneg %p137
        $region50: #{tpu_custom_call.1} parent=43 // pred_check_branch
          %672 = sbr.rel (%p670) target = $region52
        $region51: #{tpu_custom_call.1} parent=43 // pred_region
          %s673 = smul.u32 16, %s20
          %p674 = scmp.lt.s32.totalorder %s673, 31
          %s675 = scalar_select %p674, %s673, 31
          %s676 = smul.addr %s675, 8
          %s677 = scalar_lea.vmem %s4, %s676
        $region52: #{tpu_custom_call.1} parent=43 // pred_fallthru
          _
      $region44: #{tpu_custom_call.1} parent=5 // pred_fallthru
        _
    $region6: #{tpu_custom_call.1} parent=1 // loop_footer
      %s18 = sadd.s32 1, %s14
    $region7: #{tpu_custom_call.1} parent=1 // loop_footer_branch
      %13 = sbr.rel target = $region3
    $region8: #{tpu_custom_call.1} parent=1 // loop_exit
      _
    %678 = vsyncpa [#allocation3], 1
    %s679 = scalar_lea.sflag [#allocation3], 1
    %680 = vsyncpa %s679, 1

</llo_original>
